<compile_context>
chip_gen: v5e
topology: v5e:2x2
jax: 0.10.0
libtpu: 0.0.40
codegen_flags: <defaults>
</compile_context>

<pallas_src>
import functools

import numpy as np
import jax
import jax.numpy as jnp
from jax.experimental import pallas as pl
from jax.experimental.pallas import tpu as pltpu


def _fcn_head_kernel(x_ref, mask_ref, w3_ref, bnb_ref, w1_ref, b1_ref, o_ref,
                     *, W: int, apply_sigmoid: bool):
    # x_ref:    (N*Cin, HW)            batch+channels on sublanes, spatial on lanes
    # mask_ref: (9, HW)                per-tap zero-padding masks (compile-time constants)
    # w3_ref:   (N*Cout, 9*N*Cin)      BN-scale-folded 3x3 weights, batch block-diagonal
    # bnb_ref:  (N*Cout, 1)            folded BN bias (beta - mean * gamma/sqrt(var+eps))
    # w1_ref:   (N*n_class, N*Cout)    1x1 conv weights, batch block-diagonal
    # b1_ref:   (N*n_class, 1)         1x1 conv bias
    # o_ref:    (N*n_class, HW)        lane-dense output
    x = x_ref[...]                     # (N*Cin, HW) f32
    masks = mask_ref[...]              # (9, HW) f32 (0/1)
    HW = x.shape[1]

    # 3x3 conv taps: per-row lane rolls of the flattened plane (XLU) + padding masks (VPU).
    # Each sublane row is one (image, channel) plane, so rolls never mix images.
    taps = []
    k = 0
    for oy in (-1, 0, 1):
        for ox in (-1, 0, 1):
            s = oy * W + ox
            if s == 0:
                taps.append(x)                                   # center tap, mask == 1
            else:
                shifted = pltpu.roll(x, shift=(-s) % HW, axis=1)  # shifted[i] == x[i + s]
                taps.append(shifted * masks[k:k + 1, :])
            k += 1
    taps_stacked = jnp.concatenate(taps, axis=0)                 # (9*N*Cin, HW)

    # Conv3x3 + folded BN scale as ONE MXU matmul over the (tap, batch, channel) axis.
    conv = jnp.dot(w3_ref[...], taps_stacked,
                   preferred_element_type=jnp.float32)           # (N*Cout, HW)
    y = jnp.maximum(conv + bnb_ref[...], 0.0)                    # folded BN bias + ReLU

    # Conv1x1 (+ bias) as a second tiny MXU matmul.
    logits = jnp.dot(w1_ref[...], y,
                     preferred_element_type=jnp.float32) + b1_ref[...]
    if apply_sigmoid:                                            # static Python bool
        logits = jax.nn.sigmoid(logits)
    o_ref[...] = logits.astype(o_ref.dtype)


def fcn_head_forward(x_nchw, w3, bn_gamma, bn_beta, bn_mean, bn_var, w1, b1,
                     *, eps=1e-5):
    """Pallas implementation of _FCNHead.forward.

    x_nchw: (N, Cin, H, W) float32 (PyTorch layout).
    w3:     (Cin, Cin, 3, 3)   Conv2d weight (cout, cin, kh, kw); module uses cout == cin.
    w1:     (n_class, Cin, 1, 1), b1: (n_class,)
    Returns (N, n_class, H, W).
    """
    N, Cin, H, W = x_nchw.shape
    Cout = w3.shape[0]
    n_class = w1.shape[0]
    HW = H * W

    # Contiguous reshape only (no transpose, no pad): rows = (image, channel) planes.
    x_flat = x_nchw.reshape(N * Cin, HW).astype(jnp.float32)

    # Precompute the 9 zero-padding masks (compile-time constants per (H, W)):
    # mask_k[i] == 1 iff position i shifted by (oy, ox) stays inside the image.
    rows = np.arange(H)[:, None]
    cols = np.arange(W)[None, :]
    mask_list = []
    for oy in (-1, 0, 1):
        for ox in (-1, 0, 1):
            valid = ((rows + oy >= 0) & (rows + oy < H) &
                     (cols + ox >= 0) & (cols + ox < W))
            mask_list.append(valid.astype(np.float32).reshape(HW))
    mask9 = jnp.asarray(np.stack(mask_list, axis=0))             # (9, HW)

    # Fold BatchNorm (eval-mode running stats) into the 3x3 conv weights + a bias.
    # TODO(synk): PyTorch train-mode BN uses per-batch statistics; eval-mode semantics here.
    scale = (bn_gamma / jnp.sqrt(bn_var + eps)).astype(jnp.float32)       # (Cout,)
    bnb = (bn_beta - bn_mean * scale).astype(jnp.float32)                 # (Cout,)
    w3f = (jnp.transpose(w3, (2, 3, 0, 1)).reshape(9, Cout, Cin)
           * scale[None, :, None]).astype(jnp.float32)                    # (9, Cout, Cin)

    # Batch block-diagonal MXU operands so the sublane-packed batch never mixes.
    eye_n = jnp.eye(N, dtype=jnp.float32)
    # w3_big[b*Cout+co, k*(N*Cin)+b*Cin+ci] = w3f[k, co, ci]
    w3_big = jnp.einsum('koi,ab->aokbi', w3f, eye_n).reshape(N * Cout, 9 * N * Cin)
    bnb_big = jnp.tile(bnb, (N,)).reshape(N * Cout, 1)

    w1_2d = w1[:, :, 0, 0].astype(jnp.float32)                            # (n_class, Cout)
    # w1_big[b*n_class+nc, b*Cout+co] = w1_2d[nc, co]
    w1_big = jnp.einsum('oc,ab->aobc', w1_2d, eye_n).reshape(N * n_class, N * Cout)
    b1_big = jnp.tile(b1.astype(jnp.float32), (N,)).reshape(N * n_class, 1)

    kernel = functools.partial(_fcn_head_kernel, W=W,
                               apply_sigmoid=(n_class == 1))

    out_flat = pl.pallas_call(
        kernel,
        out_shape=jax.ShapeDtypeStruct((N * n_class, HW), jnp.float32),
        grid_spec=pltpu.PrefetchScalarGridSpec(
            num_scalar_prefetch=0,
            grid=(1,),                                           # single step: no per-image grid overhead
            in_specs=[
                pl.BlockSpec((N * Cin, HW), lambda i: (0, 0)),
                pl.BlockSpec((9, HW), lambda i: (0, 0)),
                pl.BlockSpec((N * Cout, 9 * N * Cin), lambda i: (0, 0)),
                pl.BlockSpec((N * Cout, 1), lambda i: (0, 0)),
                pl.BlockSpec((N * n_class, N * Cout), lambda i: (0, 0)),
                pl.BlockSpec((N * n_class, 1), lambda i: (0, 0)),
            ],
            out_specs=pl.BlockSpec((N * n_class, HW), lambda i: (0, 0)),
        ),
        compiler_params=pltpu.CompilerParams(
            dimension_semantics=("arbitrary",)),
    )(x_flat, mask9, w3_big, bnb_big, w1_big, b1_big)

    # Lane-dense (N*n_class, HW) -> NCHW via a free contiguous reshape (no transpose).
    return out_flat.reshape(N, n_class, H, W)


def _fcn_head_reference(x, w3, g, beta, mean, var, w1, b1, eps=1e-5):
    """Pure-JAX reference (eval-mode BN), NCHW."""
    N, Cin, H, W = x.shape
    Cout = w3.shape[0]
    n_class = w1.shape[0]
    xp = jnp.pad(x, ((0, 0), (0, 0), (1, 1), (1, 1)))
    conv = jnp.zeros((N, Cout, H, W), jnp.float32)
    for ky in range(3):
        for kx in range(3):
            patch = xp[:, :, ky:ky + H, kx:kx + W]
            conv = conv + jnp.einsum('oi,nihw->nohw', w3[:, :, ky, kx], patch)
    scale = g / jnp.sqrt(var + eps)
    y = conv * scale[None, :, None, None] + (beta - mean * scale)[None, :, None, None]
    y = jnp.maximum(y, 0.0)
    out = jnp.einsum('oi,nihw->nohw', w1[:, :, 0, 0], y) + b1[None, :, None, None]
    if n_class == 1:
        out = jax.nn.sigmoid(out)
    return out


if __name__ == "__main__":
    # Small shapes consistent with the module: batch=2, in_channels=4, 16x16, n_class=1.
    N, Cin, H, W = 2, 4, 16, 16
    n_class = 1

    key = jax.random.PRNGKey(0)
    kx, kw3, kw1, kb1, kg, kb, km, kv = jax.random.split(key, 8)

    x = jax.random.normal(kx, (N, Cin, H, W), dtype=jnp.float32)

    w3 = jax.random.normal(kw3, (Cin, Cin, 3, 3), dtype=jnp.float32) * 0.1
    w1 = jax.random.normal(kw1, (n_class, Cin, 1, 1), dtype=jnp.float32) * 0.1
    b1 = jax.random.normal(kb1, (n_class,), dtype=jnp.float32) * 0.1
    bn_gamma = 1.0 + 0.1 * jax.random.normal(kg, (Cin,), dtype=jnp.float32)
    bn_beta = 0.1 * jax.random.normal(kb, (Cin,), dtype=jnp.float32)
    bn_mean = 0.1 * jax.random.normal(km, (Cin,), dtype=jnp.float32)
    bn_var = jnp.abs(1.0 + 0.1 * jax.random.normal(kv, (Cin,), dtype=jnp.float32))

    out = fcn_head_forward(x, w3, bn_gamma, bn_beta, bn_mean, bn_var, w1, b1)
    out = jax.block_until_ready(out)
    assert out.shape == (N, n_class, H, W)

    ref = _fcn_head_reference(x, w3, bn_gamma, bn_beta, bn_mean, bn_var, w1, b1)
    err = float(jnp.max(jnp.abs(out - ref)))
    assert err < 1e-4, f"max abs error {err}"
    print("KERNEL_OK")
</pallas_src>

<mosaic_0001>
module attributes {stable_mosaic.version = 11 : i64} {
  func.func @_fcn_head_kernel(%arg0: i32, %arg1: memref<8x256xf32, #tpu.memory_space<vmem>>, %arg2: memref<9x256xf32, #tpu.memory_space<vmem>>, %arg3: memref<8x72xf32, #tpu.memory_space<vmem>>, %arg4: memref<8x1xf32, #tpu.memory_space<vmem>>, %arg5: memref<2x8xf32, #tpu.memory_space<vmem>>, %arg6: memref<2x1xf32, #tpu.memory_space<vmem>>, %arg7: memref<2x256xf32, #tpu.memory_space<vmem>>) attributes {dimension_semantics = [#tpu.dimension_semantics<arbitrary>], iteration_bounds = array<i64: 1>, scalar_prefetch = 0 : i64, scratch_operands = 0 : i64, tpu.core_type = #tpu.core_type<tc>, window_params = [{pipeline_mode = #tpu.pipeline_mode<synchronous>, transform_indices = @transform_0, window_bounds = array<i64: 8, 256>}, {pipeline_mode = #tpu.pipeline_mode<synchronous>, transform_indices = @transform_1, window_bounds = array<i64: 9, 256>}, {pipeline_mode = #tpu.pipeline_mode<synchronous>, transform_indices = @transform_2, window_bounds = array<i64: 8, 72>}, {pipeline_mode = #tpu.pipeline_mode<synchronous>, transform_indices = @transform_3, window_bounds = array<i64: 8, 1>}, {pipeline_mode = #tpu.pipeline_mode<synchronous>, transform_indices = @transform_4, window_bounds = array<i64: 2, 8>}, {pipeline_mode = #tpu.pipeline_mode<synchronous>, transform_indices = @transform_5, window_bounds = array<i64: 2, 1>}, {pipeline_mode = #tpu.pipeline_mode<synchronous>, transform_indices = @transform_6, window_bounds = array<i64: 2, 256>}]} {
    %c0 = arith.constant 0 : index
    %c0_0 = arith.constant 0 : index
    %0 = vector.load %arg1[%c0, %c0_0] : memref<8x256xf32, #tpu.memory_space<vmem>>, vector<8x256xf32>
    %c0_1 = arith.constant 0 : index
    %c0_2 = arith.constant 0 : index
    %1 = vector.load %arg2[%c0_1, %c0_2] : memref<9x256xf32, #tpu.memory_space<vmem>>, vector<9x256xf32>
    %c17_i32 = arith.constant 17 : i32
    %2 = tpu.dynamic_rotate %0 by %c17_i32 dim 1 : vector<8x256xf32>, i32 -> vector<8x256xf32>
    %3 = vector.extract_strided_slice %1 {offsets = [0, 0], sizes = [1, 256], strides = [1, 1]} : vector<9x256xf32> to vector<1x256xf32>
    %4 = vector.broadcast %3 : vector<1x256xf32> to vector<8x256xf32>
    %5 = arith.mulf %2, %4 : vector<8x256xf32>
    %c16_i32 = arith.constant 16 : i32
    %6 = tpu.dynamic_rotate %0 by %c16_i32 dim 1 : vector<8x256xf32>, i32 -> vector<8x256xf32>
    %7 = vector.extract_strided_slice %1 {offsets = [1, 0], sizes = [1, 256], strides = [1, 1]} : vector<9x256xf32> to vector<1x256xf32>
    %8 = vector.broadcast %7 : vector<1x256xf32> to vector<8x256xf32>
    %9 = arith.mulf %6, %8 : vector<8x256xf32>
    %c15_i32 = arith.constant 15 : i32
    %10 = tpu.dynamic_rotate %0 by %c15_i32 dim 1 : vector<8x256xf32>, i32 -> vector<8x256xf32>
    %11 = vector.extract_strided_slice %1 {offsets = [2, 0], sizes = [1, 256], strides = [1, 1]} : vector<9x256xf32> to vector<1x256xf32>
    %12 = vector.broadcast %11 : vector<1x256xf32> to vector<8x256xf32>
    %13 = arith.mulf %10, %12 : vector<8x256xf32>
    %c1_i32 = arith.constant 1 : i32
    %14 = tpu.dynamic_rotate %0 by %c1_i32 dim 1 : vector<8x256xf32>, i32 -> vector<8x256xf32>
    %15 = vector.extract_strided_slice %1 {offsets = [3, 0], sizes = [1, 256], strides = [1, 1]} : vector<9x256xf32> to vector<1x256xf32>
    %16 = vector.broadcast %15 : vector<1x256xf32> to vector<8x256xf32>
    %17 = arith.mulf %14, %16 : vector<8x256xf32>
    %c255_i32 = arith.constant 255 : i32
    %18 = tpu.dynamic_rotate %0 by %c255_i32 dim 1 : vector<8x256xf32>, i32 -> vector<8x256xf32>
    %19 = vector.extract_strided_slice %1 {offsets = [5, 0], sizes = [1, 256], strides = [1, 1]} : vector<9x256xf32> to vector<1x256xf32>
    %20 = vector.broadcast %19 : vector<1x256xf32> to vector<8x256xf32>
    %21 = arith.mulf %18, %20 : vector<8x256xf32>
    %c241_i32 = arith.constant 241 : i32
    %22 = tpu.dynamic_rotate %0 by %c241_i32 dim 1 : vector<8x256xf32>, i32 -> vector<8x256xf32>
    %23 = vector.extract_strided_slice %1 {offsets = [6, 0], sizes = [1, 256], strides = [1, 1]} : vector<9x256xf32> to vector<1x256xf32>
    %24 = vector.broadcast %23 : vector<1x256xf32> to vector<8x256xf32>
    %25 = arith.mulf %22, %24 : vector<8x256xf32>
    %c240_i32 = arith.constant 240 : i32
    %26 = tpu.dynamic_rotate %0 by %c240_i32 dim 1 : vector<8x256xf32>, i32 -> vector<8x256xf32>
    %27 = vector.extract_strided_slice %1 {offsets = [7, 0], sizes = [1, 256], strides = [1, 1]} : vector<9x256xf32> to vector<1x256xf32>
    %28 = vector.broadcast %27 : vector<1x256xf32> to vector<8x256xf32>
    %29 = arith.mulf %26, %28 : vector<8x256xf32>
    %c239_i32 = arith.constant 239 : i32
    %30 = tpu.dynamic_rotate %0 by %c239_i32 dim 1 : vector<8x256xf32>, i32 -> vector<8x256xf32>
    %31 = vector.extract_strided_slice %1 {offsets = [8, 0], sizes = [1, 256], strides = [1, 1]} : vector<9x256xf32> to vector<1x256xf32>
    %32 = vector.broadcast %31 : vector<1x256xf32> to vector<8x256xf32>
    %33 = arith.mulf %30, %32 : vector<8x256xf32>
    %34 = tpu.concatenate %5, %9, %13, %17, %0, %21, %25, %29, %33 in 0 : vector<8x256xf32>, vector<8x256xf32>, vector<8x256xf32>, vector<8x256xf32>, vector<8x256xf32>, vector<8x256xf32>, vector<8x256xf32>, vector<8x256xf32>, vector<8x256xf32> -> vector<72x256xf32>
    %c0_3 = arith.constant 0 : index
    %c0_4 = arith.constant 0 : index
    %35 = vector.load %arg3[%c0_3, %c0_4] : memref<8x72xf32, #tpu.memory_space<vmem>>, vector<8x72xf32>
    %cst = arith.constant dense<0.000000e+00> : vector<8x256xf32>
    %36 = tpu.matmul %35, %34, %cst {dimension_numbers = #tpu.dot_dimension_numbers<[1], [0], [0], [1], [0, 0, 1, 1], [], []>} : vector<8x72xf32>, vector<72x256xf32>, vector<8x256xf32> -> vector<8x256xf32>
    %c0_5 = arith.constant 0 : index
    %c0_6 = arith.constant 0 : index
    %37 = vector.load %arg4[%c0_5, %c0_6] : memref<8x1xf32, #tpu.memory_space<vmem>>, vector<8x1xf32>
    %38 = vector.broadcast %37 : vector<8x1xf32> to vector<8x256xf32>
    %39 = arith.addf %36, %38 : vector<8x256xf32>
    %cst_7 = arith.constant 0.000000e+00 : f32
    %40 = vector.broadcast %cst_7 : f32 to vector<8x256xf32>
    %41 = arith.maximumf %39, %40 : vector<8x256xf32>
    %c0_8 = arith.constant 0 : index
    %c0_9 = arith.constant 0 : index
    %42 = vector.load %arg5[%c0_8, %c0_9] : memref<2x8xf32, #tpu.memory_space<vmem>>, vector<2x8xf32>
    %cst_10 = arith.constant dense<0.000000e+00> : vector<2x256xf32>
    %43 = tpu.matmul %42, %41, %cst_10 {dimension_numbers = #tpu.dot_dimension_numbers<[1], [0], [0], [1], [0, 0, 1, 1], [], []>} : vector<2x8xf32>, vector<8x256xf32>, vector<2x256xf32> -> vector<2x256xf32>
    %c0_11 = arith.constant 0 : index
    %c0_12 = arith.constant 0 : index
    %44 = vector.load %arg6[%c0_11, %c0_12] : memref<2x1xf32, #tpu.memory_space<vmem>>, vector<2x1xf32>
    %45 = vector.broadcast %44 : vector<2x1xf32> to vector<2x256xf32>
    %46 = arith.addf %43, %45 : vector<2x256xf32>
    %47 = arith.negf %46 : vector<2x256xf32>
    %48 = math.exp %47 : vector<2x256xf32>
    %cst_13 = arith.constant 1.000000e+00 : f32
    %49 = vector.broadcast %cst_13 : f32 to vector<2x256xf32>
    %50 = arith.addf %49, %48 : vector<2x256xf32>
    %51 = arith.divf %49, %50 : vector<2x256xf32>
    %c0_14 = arith.constant 0 : index
    %c0_15 = arith.constant 0 : index
    %52 = vector.load %arg7[%c0_14, %c0_15] : memref<2x256xf32, #tpu.memory_space<vmem>>, vector<2x256xf32>
    tpu.vector_store %arg7[%c0_14, %c0_15], %51 {strides = array<i32>} : memref<2x256xf32, #tpu.memory_space<vmem>>, vector<2x256xf32>,
    return
  }
  func.func @transform_0(%arg0: i32) -> (i32, i32) {
    %c0_i32 = arith.constant 0 : i32
    %c0_i32_0 = arith.constant 0 : i32
    %c0_i32_1 = arith.constant 0 : i32
    return %c0_i32, %c0_i32_0 : i32, i32
  }
  func.func @transform_1(%arg0: i32) -> (i32, i32) {
    %c0_i32 = arith.constant 0 : i32
    %c0_i32_0 = arith.constant 0 : i32
    %c0_i32_1 = arith.constant 0 : i32
    return %c0_i32, %c0_i32_0 : i32, i32
  }
  func.func @transform_2(%arg0: i32) -> (i32, i32) {
    %c0_i32 = arith.constant 0 : i32
    %c0_i32_0 = arith.constant 0 : i32
    %c0_i32_1 = arith.constant 0 : i32
    return %c0_i32, %c0_i32_0 : i32, i32
  }
  func.func @transform_3(%arg0: i32) -> (i32, i32) {
    %c0_i32 = arith.constant 0 : i32
    %c0_i32_0 = arith.constant 0 : i32
    %c0_i32_1 = arith.constant 0 : i32
    return %c0_i32, %c0_i32_0 : i32, i32
  }
  func.func @transform_4(%arg0: i32) -> (i32, i32) {
    %c0_i32 = arith.constant 0 : i32
    %c0_i32_0 = arith.constant 0 : i32
    %c0_i32_1 = arith.constant 0 : i32
    return %c0_i32, %c0_i32_0 : i32, i32
  }
  func.func @transform_5(%arg0: i32) -> (i32, i32) {
    %c0_i32 = arith.constant 0 : i32
    %c0_i32_0 = arith.constant 0 : i32
    %c0_i32_1 = arith.constant 0 : i32
    return %c0_i32, %c0_i32_0 : i32, i32
  }
  func.func @transform_6(%arg0: i32) -> (i32, i32) {
    %c0_i32 = arith.constant 0 : i32
    %c0_i32_0 = arith.constant 0 : i32
    %c0_i32_1 = arith.constant 0 : i32
    return %c0_i32, %c0_i32_0 : i32, i32
  }
}

</mosaic_0001>

<llo_original>
// kernel: tpu_custom_call.1
$region0: #{tpu_custom_call.1}
  #allocation0 [shape = 'u32[]', space=smem, size = 0x4, offset = 0x4, fixed_abs, tag = 'smem constant byte address 0x4 - core index']
  #allocation1 [shape = 'u32[72,128]{1,0:T(1,128)}', space=vmem, size = 0x9000, scoped, tag = 'internal scratch']
  %s0 = inlined_call_operand.hbm [shape: f32[8,256], index: 0, kind: input, shape index: {}]
  %s1 = inlined_call_operand.hbm [shape: f32[9,256], index: 1, kind: input, shape index: {}]
  %s2 = inlined_call_operand.vmem [shape: f32[8,72], index: 2, kind: input, shape index: {}]
  %s3 = inlined_call_operand.vmem [shape: f32[8,1], index: 3, kind: input, shape index: {}]
  %s4 = inlined_call_operand.vmem [shape: f32[2,8], index: 4, kind: input, shape index: {}]
  %s5 = inlined_call_operand.vmem [shape: f32[2,1], index: 5, kind: input, shape index: {}]
  %s6 = inlined_call_operand.hbm [shape: f32[2,256], index: 6, kind: output, shape index: {}]
  %s7 = sld [smem:[#allocation0]]
  $region42: #{tpu_custom_call.1} parent=0
    _
  %s9 = ssub.s32 1, %s7
  %s10 = scalar_select 0, %s9, %s7
  $region1: #{tpu_custom_call.1} parent=0
    #allocation2 [shape = 'u8[8192]{0}', space=vmem, size = 0x2000, scoped, tag = 'input window, operand 0, single buffered']
    #allocation3 [shape = 's32[1]{0}', space=sflag, size = 0x4, scoped, tag = 'scoped memory for tpu_custom_call.1']
    #allocation4 [shape = 's32[1]{0}', space=sflag, size = 0x4, scoped, tag = 'scoped memory for tpu_custom_call.1']
    #allocation5 [shape = 'u8[16384]{0}', space=vmem, size = 0x4000, scoped, tag = 'input window, operand 1, single buffered']
    #allocation6 [shape = 's32[1]{0}', space=sflag, size = 0x4, scoped, tag = 'scoped memory for tpu_custom_call.1']
    #allocation7 [shape = 'u8[2048]{0}', space=vmem, size = 0x800, scoped, tag = 'output window, operand 0, single buffered']
    %11 = vsyncpa [#allocation3], 0
    %12 = vsyncpa [#allocation6], 0
    %13 = vsyncpa [#allocation4], 0
    // Predicated region
    $region2: #{tpu_custom_call.1} parent=1 // pred_check
      _
    $region3: #{tpu_custom_call.1} parent=1 // pred_check_branch
      %15 = sbr.rel (0) target = $region5
    $region4: #{tpu_custom_call.1} parent=1 // pred_region
      %17 = vsyncadd [#allocation3], 0
      %s19 = sshll.u32 %s0, 4
      %s20 = int_to_ptr.hbm [resolvable:$true] %s19
      %s21 = sshll.u32 [#allocation2], 4
      %s22 = int_to_ptr.vmem [resolvable:$true] %s21
      %24 = dma.hbm_to_vmem [thread:$0]  %s20, 256, %s22, [#allocation3]
    $region5: #{tpu_custom_call.1} parent=1 // pred_fallthru
      _
    // Predicated region
    $region6: #{tpu_custom_call.1} parent=1 // pred_check
      _
    $region7: #{tpu_custom_call.1} parent=1 // pred_check_branch
      %26 = sbr.rel (0) target = $region9
    $region8: #{tpu_custom_call.1} parent=1 // pred_region
      %28 = vsyncadd [#allocation6], 0
      %s29 = sshll.u32 %s1, 4
      %s30 = int_to_ptr.hbm [resolvable:$true] %s29
      %s31 = sshll.u32 [#allocation5], 4
      %s32 = int_to_ptr.vmem [resolvable:$true] %s31
      %37 = dma.hbm_to_vmem [thread:$0]  %s30, 512, %s32, [#allocation6], 256, 256, 16
    $region9: #{tpu_custom_call.1} parent=1 // pred_fallthru
      _
    // Predicated region
    $region10: #{tpu_custom_call.1} parent=1 // pred_check
      _
    $region11: #{tpu_custom_call.1} parent=1 // pred_check_branch
      %39 = sbr.rel (0) target = $region13
    $region12: #{tpu_custom_call.1} parent=1 // pred_region
      _
    $region13: #{tpu_custom_call.1} parent=1 // pred_fallthru
      _
    // Predicated region
    $region14: #{tpu_custom_call.1} parent=1 // pred_check
      _
    $region15: #{tpu_custom_call.1} parent=1 // pred_check_branch
      %41 = sbr.rel (0) target = $region17
    $region16: #{tpu_custom_call.1} parent=1 // pred_region
      _
    $region17: #{tpu_custom_call.1} parent=1 // pred_fallthru
      _
    // Predicated region
    $region18: #{tpu_custom_call.1} parent=1 // pred_check
      _
    $region19: #{tpu_custom_call.1} parent=1 // pred_check_branch
      %43 = sbr.rel (0) target = $region21
    $region20: #{tpu_custom_call.1} parent=1 // pred_region
      _
    $region21: #{tpu_custom_call.1} parent=1 // pred_fallthru
      _
    // Predicated region
    $region22: #{tpu_custom_call.1} parent=1 // pred_check
      _
    $region23: #{tpu_custom_call.1} parent=1 // pred_check_branch
      %45 = sbr.rel (0) target = $region25
    $region24: #{tpu_custom_call.1} parent=1 // pred_region
      _
    $region25: #{tpu_custom_call.1} parent=1 // pred_fallthru
      _
    // Predicated region
    $region26: #{tpu_custom_call.1} parent=1 // pred_check
      _
    $region27: #{tpu_custom_call.1} parent=1 // pred_check_branch
      %47 = sbr.rel (0) target = $region29
    $region28: #{tpu_custom_call.1} parent=1 // pred_region
      %49 = dma.done [#allocation3], 256
    $region29: #{tpu_custom_call.1} parent=1 // pred_fallthru
      _
    // Predicated region
    $region30: #{tpu_custom_call.1} parent=1 // pred_check
      _
    $region31: #{tpu_custom_call.1} parent=1 // pred_check_branch
      %51 = sbr.rel (0) target = $region33
    $region32: #{tpu_custom_call.1} parent=1 // pred_region
      %53 = dma.done [#allocation6], 512
    $region33: #{tpu_custom_call.1} parent=1 // pred_fallthru
      _
    %v54 = vld [vmem:[#allocation2] sm:$0xff]
    %v55 = vld [vmem:[#allocation2 + $0x8] sm:$0xff]
    %v56 = vld [vmem:[#allocation5] sm:$0xff]
    %v57 = vld [vmem:[#allocation5 + $0x8] sm:$0xff]
    %v58 = vld [vmem:[#allocation5 + $0x10] sm:$0x1]
    %v59 = vld [vmem:[#allocation5 + $0x18] sm:$0x1]
    %60 = vrot.lane.b32.xlu0 %v54, 17
    %v61 = vpop.permute.xlu0 %60
    %62 = vrot.lane.b32.xlu0 %v55, 17
    %v63 = vpop.permute.xlu0 %62
    %v64 = vlaneseq
    %v65 = vand.u32 %v64, 127
    %vm66 = vcmp.lt.s32.totalorder %v65, 17
    %v67 = vsel %vm66, %v61, %v63
    %v68 = vsel %vm66, %v63, %v61
    %v69 = vperm.slane %v56, 0
    %v70 = vperm.slane %v57, 0
    %v71 = vmul.f32 %v68, %v69
    %v72 = vmul.f32 %v67, %v70
    %73 = vrot.lane.b32.xlu0 %v54, 16
    %v74 = vpop.permute.xlu0 %73
    %75 = vrot.lane.b32.xlu0 %v55, 16
    %v76 = vpop.permute.xlu0 %75
    %vm77 = vcmp.lt.s32.totalorder %v65, 16
    %v78 = vsel %vm77, %v74, %v76
    %v79 = vsel %vm77, %v76, %v74
    %v80 = vperm.slane %v56, 1
    %v81 = vperm.slane %v57, 1
    %v82 = vmul.f32 %v79, %v80
    %v83 = vmul.f32 %v78, %v81
    %84 = vrot.lane.b32.xlu0 %v54, 15
    %v85 = vpop.permute.xlu0 %84
    %86 = vrot.lane.b32.xlu0 %v55, 15
    %v87 = vpop.permute.xlu0 %86
    %vm88 = vcmp.lt.s32.totalorder %v65, 15
    %v89 = vsel %vm88, %v85, %v87
    %v90 = vsel %vm88, %v87, %v85
    %v91 = vperm.slane %v56, 2
    %v92 = vperm.slane %v57, 2
    %v93 = vmul.f32 %v90, %v91
    %v94 = vmul.f32 %v89, %v92
    %95 = vrot.lane.b32.xlu0 %v54, 1
    %v96 = vpop.permute.xlu0 %95
    %97 = vrot.lane.b32.xlu0 %v55, 1
    %v98 = vpop.permute.xlu0 %97
    %vm99 = vcmp.lt.s32.totalorder %v65, 1
    %v100 = vsel %vm99, %v96, %v98
    %v101 = vsel %vm99, %v98, %v96
    %v102 = vperm.slane %v56, 3
    %v103 = vperm.slane %v57, 3
    %v104 = vmul.f32 %v101, %v102
    %v105 = vmul.f32 %v100, %v103
    %106 = vrot.lane.b32.xlu0 %v54, 127
    %v107 = vpop.permute.xlu0 %106
    %108 = vrot.lane.b32.xlu0 %v55, 127
    %v109 = vpop.permute.xlu0 %108
    %vm110 = vcmp.lt.s32.totalorder %v65, 127
    %v111 = vsel %vm110, %v107, %v109
    %v112 = vsel %vm110, %v109, %v107
    %v113 = vperm.slane %v56, 5
    %v114 = vperm.slane %v57, 5
    %v115 = vmul.f32 %v111, %v113
    %v116 = vmul.f32 %v112, %v114
    %117 = vrot.lane.b32.xlu0 %v54, 113
    %v118 = vpop.permute.xlu0 %117
    %119 = vrot.lane.b32.xlu0 %v55, 113
    %v120 = vpop.permute.xlu0 %119
    %vm121 = vcmp.lt.s32.totalorder %v65, 113
    %v122 = vsel %vm121, %v118, %v120
    %v123 = vsel %vm121, %v120, %v118
    %v124 = vperm.slane %v56, 6
    %v125 = vperm.slane %v57, 6
    %v126 = vmul.f32 %v122, %v124
    %v127 = vmul.f32 %v123, %v125
    %128 = vrot.lane.b32.xlu0 %v54, 112
    %v129 = vpop.permute.xlu0 %128
    %130 = vrot.lane.b32.xlu0 %v55, 112
    %v131 = vpop.permute.xlu0 %130
    %vm132 = vcmp.lt.s32.totalorder %v65, 112
    %v133 = vsel %vm132, %v129, %v131
    %v134 = vsel %vm132, %v131, %v129
    %v135 = vperm.slane %v56, 7
    %v136 = vperm.slane %v57, 7
    %v137 = vmul.f32 %v133, %v135
    %v138 = vmul.f32 %v134, %v136
    %139 = vrot.lane.b32.xlu0 %v54, 111
    %v140 = vpop.permute.xlu0 %139
    %141 = vrot.lane.b32.xlu0 %v55, 111
    %v142 = vpop.permute.xlu0 %141
    %vm143 = vcmp.lt.s32.totalorder %v65, 111
    %v144 = vsel %vm143, %v140, %v142
    %v145 = vsel %vm143, %v142, %v140
    %v146 = vperm.slane %v58, 0
    %v147 = vperm.slane %v59, 0
    %v148 = vmul.f32 %v144, %v146
    %v149 = vmul.f32 %v145, %v147
    %v150 = vld [vmem:[%s2] sm:$0xff]
    %v151 = vld [vmem:[%s3] sm:$0xff]
    %153 = vset.pattern.permute.xlu0 0
    %154 = vperm.xlu0 %153, %v151
    %v155 = vpop.permute.xlu0 %154
    %vm157 = vcmask 588800
    %v159 = vsel %vm157, %v150, 0
    %161 = vmatpush.msra.mxu0 0.0
    %162 = vmatpush.msra.mxu0 0.0
    %163 = vmatpush.msra.mxu0 0.0
    %164 = vmatpush.msra.mxu0 0.0
    %165 = vmatpush.msra.mxu0 0.0
    %166 = vmatpush.msra.mxu0 0.0
    %167 = vmatpush.msra.mxu0 0.0
    %168 = vmatpush.msra.mxu0 %v148
    %169 = vmatpush.msra.mxu0 %v137
    %170 = vmatpush.msra.mxu0 %v126
    %171 = vmatpush.msra.mxu0 %v115
    %172 = vmatpush.msra.mxu0 %v54
    %173 = vmatpush.msra.mxu0 %v104
    %174 = vmatpush.msra.mxu0 %v93
    %175 = vmatpush.msra.mxu0 %v82
    %176 = vmatpush.msra.mxu0 %v71
    %177 = vmatmul.f32.gmra.mxu0 %v159
    %v178 = vpop.f32.mrf.mxu0
    %v179 = vadd.f32 %v155, %v178
    %180 = vdwg.mxu0
    %181 = vmatpush.msra.mxu0 0.0
    %182 = vmatpush.msra.mxu0 0.0
    %183 = vmatpush.msra.mxu0 0.0
    %184 = vmatpush.msra.mxu0 0.0
    %185 = vmatpush.msra.mxu0 0.0
    %186 = vmatpush.msra.mxu0 0.0
    %187 = vmatpush.msra.mxu0 0.0
    %188 = vmatpush.msra.mxu0 %v149
    %189 = vmatpush.msra.mxu0 %v138
    %190 = vmatpush.msra.mxu0 %v127
    %191 = vmatpush.msra.mxu0 %v116
    %192 = vmatpush.msra.mxu0 %v55
    %193 = vmatpush.msra.mxu0 %v105
    %194 = vmatpush.msra.mxu0 %v94
    %195 = vmatpush.msra.mxu0 %v83
    %196 = vmatpush.msra.mxu0 %v72
    %197 = vmatmul.f32.gmra.mxu0 %v159
    %v198 = vpop.f32.mrf.mxu0
    %v199 = vadd.f32 %v155, %v198
    %200 = vdwg.mxu0
    %v201 = vmax.f32 %v179, 0.0
    %v202 = vmax.f32 %v199, 0.0
    %v203 = vld [vmem:[%s4] sm:$0x3]
    %v204 = vld [vmem:[%s5] sm:$0x3]
    %206 = vset.pattern.permute.xlu0 0
    %207 = vperm.xlu0 %206, %v204
    %v208 = vpop.permute.xlu0 %207
    %vm210 = vcmask 64512
    %v212 = vsel %vm210, %v203, 0
    %214 = vmatpush.msra.mxu0 0.0
    %215 = vmatpush.msra.mxu0 0.0
    %216 = vmatpush.msra.mxu0 0.0
    %217 = vmatpush.msra.mxu0 0.0
    %218 = vmatpush.msra.mxu0 0.0
    %219 = vmatpush.msra.mxu0 0.0
    %220 = vmatpush.msra.mxu0 0.0
    %221 = vmatpush.msra.mxu0 0.0
    %222 = vmatpush.msra.mxu0 0.0
    %223 = vmatpush.msra.mxu0 0.0
    %224 = vmatpush.msra.mxu0 0.0
    %225 = vmatpush.msra.mxu0 0.0
    %226 = vmatpush.msra.mxu0 0.0
    %227 = vmatpush.msra.mxu0 0.0
    %228 = vmatpush.msra.mxu0 0.0
    %229 = vmatpush.msra.mxu0 %v201
    %230 = vmatmul.f32.gmra.mxu0 %v212
    %v231 = vpop.f32.mrf.mxu0
    %v232 = vadd.f32 %v208, %v231
    %233 = vdwg.mxu0
    %234 = vmatpush.msra.mxu0 0.0
    %235 = vmatpush.msra.mxu0 0.0
    %236 = vmatpush.msra.mxu0 0.0
    %237 = vmatpush.msra.mxu0 0.0
    %238 = vmatpush.msra.mxu0 0.0
    %239 = vmatpush.msra.mxu0 0.0
    %240 = vmatpush.msra.mxu0 0.0
    %241 = vmatpush.msra.mxu0 0.0
    %242 = vmatpush.msra.mxu0 0.0
    %243 = vmatpush.msra.mxu0 0.0
    %244 = vmatpush.msra.mxu0 0.0
    %245 = vmatpush.msra.mxu0 0.0
    %246 = vmatpush.msra.mxu0 0.0
    %247 = vmatpush.msra.mxu0 0.0
    %248 = vmatpush.msra.mxu0 0.0
    %249 = vmatpush.msra.mxu0 %v202
    %250 = vmatmul.f32.gmra.mxu0 %v212
    %v251 = vpop.f32.mrf.mxu0
    %v252 = vadd.f32 %v208, %v251
    %253 = vdwg.mxu0
    %v254 = vxor.u32 %v232, 2147483648
    %v255 = vxor.u32 %v252, 2147483648
    %v256 = vmul.f32 %v254, 1.442695
    %v257 = vpow.pop %v256
    %v258 = vmul.f32 %v255, 1.442695
    %v259 = vpow.pop %v258
    %v260 = vadd.f32 %v257, 1.0
    %v261 = vadd.f32 %v259, 1.0
    %v262 = vrcp.pop %v260
    %v263 = vmul.f32 %v260, %v262
    %v264 = vsub.f32 1.0, %v263
    %v265 = vmul.f32 %v262, %v264
    %v266 = vadd.f32 %v262, %v265
    %vm267 = vweird.f32 %v260
    %vm268 = vweird.f32 %v262
    %vm269 = vmor %vm267, %vm268
    %v270 = vsel %vm269, %v262, %v266
    %v271 = vand.u32 2147483647, %v260
    %vm272 = vcmp.eq.f32.partialorder %v271, 8.507059e+37
    %v273 = vand.u32 %v260, 2147483648
    %v274 = vor.u32 1.1754944e-38, %v273
    %v275 = vsel %vm272, %v274, %v270
    %v276 = vmul.f32 1.0, %v275
    %v277 = vrcp.pop %v261
    %v278 = vmul.f32 %v261, %v277
    %v279 = vsub.f32 1.0, %v278
    %v280 = vmul.f32 %v277, %v279
    %v281 = vadd.f32 %v277, %v280
    %vm282 = vweird.f32 %v261
    %vm283 = vweird.f32 %v277
    %vm284 = vmor %vm282, %vm283
    %v285 = vsel %vm284, %v277, %v281
    %v286 = vand.u32 2147483647, %v261
    %vm287 = vcmp.eq.f32.partialorder %v286, 8.507059e+37
    %v288 = vand.u32 %v261, 2147483648
    %v289 = vor.u32 1.1754944e-38, %v288
    %v290 = vsel %vm287, %v289, %v285
    %v291 = vmul.f32 1.0, %v290
    %v294 = vrot.slane %v291, 6
    %vm295 = vcmask 1041408
    %v296 = vsel %vm295, %v276, %v294
    %298 = vst [vmem:[#allocation7] sm:$0xf] %v296
    // Predicated region
    $region34: #{tpu_custom_call.1} parent=1 // pred_check
      _
    $region35: #{tpu_custom_call.1} parent=1 // pred_check_branch
      %300 = sbr.rel (0) target = $region37
    $region36: #{tpu_custom_call.1} parent=1 // pred_region
      %302 = vsyncadd [#allocation4], 0
      %s304 = sshll.u32 [#allocation7], 4
      %s305 = int_to_ptr.vmem [resolvable:$true] %s304
      %s306 = sshll.u32 %s6, 4
      %s307 = int_to_ptr.hbm [resolvable:$true] %s306
      %309 = dma.vmem_to_hbm [thread:$0]  %s305, 64, %s307, [#allocation4]
    $region37: #{tpu_custom_call.1} parent=1 // pred_fallthru
      _
    // Predicated region
    $region38: #{tpu_custom_call.1} parent=1 // pred_check
      _
    $region39: #{tpu_custom_call.1} parent=1 // pred_check_branch
      %311 = sbr.rel (0) target = $region41
    $region40: #{tpu_custom_call.1} parent=1 // pred_region
      %313 = dma.done [#allocation4], 64
    $region41: #{tpu_custom_call.1} parent=1 // pred_fallthru
      _
    %314 = vsyncpa [#allocation3], 1
    %315 = vsyncpa [#allocation6], 1
    %316 = vsyncpa [#allocation4], 1

</llo_original>
